<compile_context>
chip_gen: v7x
topology: tpu7x:2x2x1
jax: 0.10.0
libtpu: 0.0.40
codegen_flags: <defaults>
</compile_context>

<pallas_src>
import jax
import jax.numpy as jnp
from jax import lax
from jax.experimental import pallas as pl
from jax.experimental.pallas import tpu as pltpu  # noqa: F401  (TPU backend)

BN_EPS = 1e-5
LN_EPS = 1e-5


def neural_embedder_kernel(ids_ref, table_ref, w_ref, params_ref, out_ref):
    # ids_ref    : (B, S)  int32  token ids
    # table_ref  : (V, E)  f32    embedding table
    # w_ref      : (E, E)  f32    projection weight, pre-transposed (y = x @ W)
    # params_ref : (5, E)  f32    rows = [bias, bn_gamma, bn_beta, ln_gamma, ln_beta]
    # out_ref    : (B, E)  f32
    B, S = ids_ref.shape
    V, _ = table_ref.shape

    ids = ids_ref[...]                                               # (B, S)

    # Fused embedding gather + mean pool over the sequence axis:
    #   onehot(B,S,V) -> counts(B,V) -> (1/S) * counts @ table  ==  mean_s emb
    vocab_iota = lax.broadcasted_iota(jnp.int32, (B, S, V), 2)
    onehot = (vocab_iota == ids[:, :, None]).astype(jnp.float32)     # (B,S,V)
    counts = jnp.sum(onehot, axis=1)                                 # (B, V)
    pooled = jnp.dot(counts * (1.0 / S), table_ref[...],
                     preferred_element_type=jnp.float32)             # (B, E)

    params = params_ref[...]                                         # (5, E)
    bias = params[0:1, :]
    bn_g, bn_b = params[1:2, :], params[2:3, :]
    ln_g, ln_b = params[3:4, :], params[4:5, :]

    # Linear projection on the MXU (y = pooled @ W^T + b; W pre-transposed).
    proj = jnp.dot(pooled, w_ref[...],
                   preferred_element_type=jnp.float32) + bias        # (B, E)

    # BatchNorm1d, training mode: batch statistics, biased variance.
    mu = jnp.mean(proj, axis=0, keepdims=True)                       # (1, E)
    var = jnp.mean((proj - mu) ** 2, axis=0, keepdims=True)          # (1, E)
    bn = (proj - mu) * lax.rsqrt(var + BN_EPS) * bn_g + bn_b         # (B, E)

    # LayerNorm over the feature axis (biased variance).
    lmu = jnp.mean(bn, axis=1, keepdims=True)                        # (B, 1)
    lvar = jnp.mean((bn - lmu) ** 2, axis=1, keepdims=True)          # (B, 1)
    # NOTE: E=32 < 128 lanes -> masked store; acceptable at toy shapes.
    out_ref[...] = (bn - lmu) * lax.rsqrt(lvar + LN_EPS) * ln_g + ln_b


def neural_embedder(x, embed_table, w, b, bn_gamma, bn_beta, ln_gamma, ln_beta):
    """x: (B, S) int token ids.  Returns (B, E) float32."""
    B, S = x.shape
    V, E = embed_table.shape

    # torch Linear computes y = x @ W^T + b; pre-transpose so kernel does x @ W.
    w_t = jnp.asarray(w, jnp.float32).T
    # Pack bias + the four per-feature normalization params into one (5, E) input.
    params = jnp.stack(
        [b, bn_gamma, bn_beta, ln_gamma, ln_beta], axis=0).astype(jnp.float32)

    def full(shape):
        return pl.BlockSpec(shape, lambda: (0,) * len(shape))

    # TODO(synk): BatchNorm eval-mode (running-stats) path not implemented;
    # kernel matches the torch module's training-mode forward.
    return pl.pallas_call(
        neural_embedder_kernel,
        out_shape=jax.ShapeDtypeStruct((B, E), jnp.float32),
        in_specs=[full((B, S)), full((V, E)), full((E, E)), full((5, E))],
        out_specs=full((B, E)),
    )(x.astype(jnp.int32), jnp.asarray(embed_table, jnp.float32), w_t, params)


if __name__ == "__main__":
    B, S, E, V = 2, 8, 32, 16   # batch, seq len, embed dim, vocab size

    key = jax.random.PRNGKey(0)
    k_x, k_emb, k_w, k_b = jax.random.split(key, 4)

    # Parameter init matching the torch module shapes:
    #   nn.Embedding(V, E): (V, E); nn.Linear(E, E): W (E, E), b (E,)
    #   nn.BatchNorm1d(E):  gamma=1, beta=0;  nn.LayerNorm(E): gamma=1, beta=0
    embed_table = jax.random.normal(k_emb, (V, E), dtype=jnp.float32)
    bound = 1.0 / jnp.sqrt(E)
    w = jax.random.uniform(k_w, (E, E), jnp.float32, -bound, bound)
    b = jax.random.uniform(k_b, (E,), jnp.float32, -bound, bound)
    bn_gamma = jnp.ones((E,), jnp.float32)
    bn_beta = jnp.zeros((E,), jnp.float32)
    ln_gamma = jnp.ones((E,), jnp.float32)
    ln_beta = jnp.zeros((E,), jnp.float32)

    x = jax.random.randint(k_x, (B, S), 0, V, dtype=jnp.int32)

    out = neural_embedder(x, embed_table, w, b, bn_gamma, bn_beta,
                          ln_gamma, ln_beta)
    jax.block_until_ready(out)

    # Pure-JAX, torch-faithful reference.
    emb = jnp.take(embed_table, x, axis=0)
    pooled = jnp.mean(emb, axis=1)
    proj = pooled @ w.T + b
    mu = proj.mean(0, keepdims=True)
    var = ((proj - mu) ** 2).mean(0, keepdims=True)
    bn = (proj - mu) / jnp.sqrt(var + BN_EPS) * bn_gamma + bn_beta
    lmu = bn.mean(1, keepdims=True)
    lvar = ((bn - lmu) ** 2).mean(1, keepdims=True)
    ref = (bn - lmu) / jnp.sqrt(lvar + LN_EPS) * ln_gamma + ln_beta

    assert out.shape == (B, E)
    assert jnp.allclose(out, ref, atol=1e-4, rtol=1e-4), \
        float(jnp.max(jnp.abs(out - ref)))
    print("KERNEL_OK")
</pallas_src>

<mosaic_0001>
module attributes {stable_mosaic.version = 11 : i64} {
  func.func @neural_embedder_kernel(%arg0: memref<2x8xi32, #tpu.memory_space<vmem>>, %arg1: memref<16x32xf32, #tpu.memory_space<vmem>>, %arg2: memref<32x32xf32, #tpu.memory_space<vmem>>, %arg3: memref<5x32xf32, #tpu.memory_space<vmem>>, %arg4: memref<2x32xf32, #tpu.memory_space<vmem>>) attributes {dimension_semantics = [], scalar_prefetch = 0 : i64, scratch_operands = 0 : i64, tpu.core_type = #tpu.core_type<tc>} {
    %c0 = arith.constant 0 : index
    %c0_0 = arith.constant 0 : index
    %0 = vector.load %arg0[%c0, %c0_0] : memref<2x8xi32, #tpu.memory_space<vmem>>, vector<2x8xi32>
    %1 = tpu.iota {dimensions = array<i32: 2>} : vector<2x8x16xi32>
    %2 = vector.shape_cast %0 : vector<2x8xi32> to vector<2x8x1xi32>
    %3 = vector.broadcast %2 : vector<2x8x1xi32> to vector<2x8x16xi32>
    %4 = arith.cmpi eq, %1, %3 : vector<2x8x16xi32>
    %5 = arith.extui %4 : vector<2x8x16xi1> to vector<2x8x16xi32>
    %6 = arith.sitofp %5 : vector<2x8x16xi32> to vector<2x8x16xf32>
    %cst = arith.constant dense<0.000000e+00> : vector<2x16xf32>
    %7 = vector.multi_reduction <add>, %6, %cst [1] : vector<2x8x16xf32> to vector<2x16xf32>
    %cst_1 = arith.constant 1.250000e-01 : f32
    %8 = vector.broadcast %cst_1 : f32 to vector<2x16xf32>
    %9 = arith.mulf %7, %8 : vector<2x16xf32>
    %c0_2 = arith.constant 0 : index
    %c0_3 = arith.constant 0 : index
    %10 = vector.load %arg1[%c0_2, %c0_3] : memref<16x32xf32, #tpu.memory_space<vmem>>, vector<16x32xf32>
    %cst_4 = arith.constant dense<0.000000e+00> : vector<2x32xf32>
    %11 = tpu.matmul %9, %10, %cst_4 {dimension_numbers = #tpu.dot_dimension_numbers<[1], [0], [0], [1], [0, 0, 1, 1], [], []>} : vector<2x16xf32>, vector<16x32xf32>, vector<2x32xf32> -> vector<2x32xf32>
    %c0_5 = arith.constant 0 : index
    %c0_6 = arith.constant 0 : index
    %12 = vector.load %arg3[%c0_5, %c0_6] : memref<5x32xf32, #tpu.memory_space<vmem>>, vector<5x32xf32>
    %13 = vector.extract_strided_slice %12 {offsets = [0, 0], sizes = [1, 32], strides = [1, 1]} : vector<5x32xf32> to vector<1x32xf32>
    %14 = vector.extract_strided_slice %12 {offsets = [1, 0], sizes = [1, 32], strides = [1, 1]} : vector<5x32xf32> to vector<1x32xf32>
    %15 = vector.extract_strided_slice %12 {offsets = [2, 0], sizes = [1, 32], strides = [1, 1]} : vector<5x32xf32> to vector<1x32xf32>
    %16 = vector.extract_strided_slice %12 {offsets = [3, 0], sizes = [1, 32], strides = [1, 1]} : vector<5x32xf32> to vector<1x32xf32>
    %17 = vector.extract_strided_slice %12 {offsets = [4, 0], sizes = [1, 32], strides = [1, 1]} : vector<5x32xf32> to vector<1x32xf32>
    %c0_7 = arith.constant 0 : index
    %c0_8 = arith.constant 0 : index
    %18 = vector.load %arg2[%c0_7, %c0_8] : memref<32x32xf32, #tpu.memory_space<vmem>>, vector<32x32xf32>
    %cst_9 = arith.constant dense<0.000000e+00> : vector<2x32xf32>
    %19 = tpu.matmul %11, %18, %cst_9 {dimension_numbers = #tpu.dot_dimension_numbers<[1], [0], [0], [1], [0, 0, 1, 1], [], []>} : vector<2x32xf32>, vector<32x32xf32>, vector<2x32xf32> -> vector<2x32xf32>
    %20 = vector.broadcast %13 : vector<1x32xf32> to vector<2x32xf32>
    %21 = arith.addf %19, %20 : vector<2x32xf32>
    %cst_10 = arith.constant dense<0.000000e+00> : vector<32xf32>
    %22 = vector.multi_reduction <add>, %21, %cst_10 [0] : vector<2x32xf32> to vector<32xf32>
    %23 = vector.shape_cast %22 : vector<32xf32> to vector<1x32xf32>
    %cst_11 = arith.constant 2.000000e+00 : f32
    %24 = vector.broadcast %cst_11 : f32 to vector<1x32xf32>
    %25 = arith.divf %23, %24 : vector<1x32xf32>
    %26 = vector.broadcast %25 : vector<1x32xf32> to vector<2x32xf32>
    %27 = arith.subf %21, %26 : vector<2x32xf32>
    %28 = arith.mulf %27, %27 : vector<2x32xf32>
    %cst_12 = arith.constant dense<0.000000e+00> : vector<32xf32>
    %29 = vector.multi_reduction <add>, %28, %cst_12 [0] : vector<2x32xf32> to vector<32xf32>
    %30 = vector.shape_cast %29 : vector<32xf32> to vector<1x32xf32>
    %cst_13 = arith.constant 2.000000e+00 : f32
    %31 = vector.broadcast %cst_13 : f32 to vector<1x32xf32>
    %32 = arith.divf %30, %31 : vector<1x32xf32>
    %33 = vector.broadcast %25 : vector<1x32xf32> to vector<2x32xf32>
    %34 = arith.subf %21, %33 : vector<2x32xf32>
    %cst_14 = arith.constant 9.99999974E-6 : f32
    %35 = vector.broadcast %cst_14 : f32 to vector<1x32xf32>
    %36 = arith.addf %32, %35 : vector<1x32xf32>
    %37 = math.rsqrt %36 : vector<1x32xf32>
    %38 = vector.broadcast %37 : vector<1x32xf32> to vector<2x32xf32>
    %39 = arith.mulf %34, %38 : vector<2x32xf32>
    %40 = vector.broadcast %14 : vector<1x32xf32> to vector<2x32xf32>
    %41 = arith.mulf %39, %40 : vector<2x32xf32>
    %42 = vector.broadcast %15 : vector<1x32xf32> to vector<2x32xf32>
    %43 = arith.addf %41, %42 : vector<2x32xf32>
    %cst_15 = arith.constant dense<0.000000e+00> : vector<2xf32>
    %44 = vector.multi_reduction <add>, %43, %cst_15 [1] : vector<2x32xf32> to vector<2xf32>
    %45 = vector.shape_cast %44 : vector<2xf32> to vector<2x1xf32>
    %cst_16 = arith.constant 3.200000e+01 : f32
    %46 = vector.broadcast %cst_16 : f32 to vector<2x1xf32>
    %47 = arith.divf %45, %46 : vector<2x1xf32>
    %48 = vector.broadcast %47 : vector<2x1xf32> to vector<2x32xf32>
    %49 = arith.subf %43, %48 : vector<2x32xf32>
    %50 = arith.mulf %49, %49 : vector<2x32xf32>
    %cst_17 = arith.constant dense<0.000000e+00> : vector<2xf32>
    %51 = vector.multi_reduction <add>, %50, %cst_17 [1] : vector<2x32xf32> to vector<2xf32>
    %52 = vector.shape_cast %51 : vector<2xf32> to vector<2x1xf32>
    %cst_18 = arith.constant 3.200000e+01 : f32
    %53 = vector.broadcast %cst_18 : f32 to vector<2x1xf32>
    %54 = arith.divf %52, %53 : vector<2x1xf32>
    %55 = vector.broadcast %47 : vector<2x1xf32> to vector<2x32xf32>
    %56 = arith.subf %43, %55 : vector<2x32xf32>
    %cst_19 = arith.constant 9.99999974E-6 : f32
    %57 = vector.broadcast %cst_19 : f32 to vector<2x1xf32>
    %58 = arith.addf %54, %57 : vector<2x1xf32>
    %59 = math.rsqrt %58 : vector<2x1xf32>
    %60 = vector.broadcast %59 : vector<2x1xf32> to vector<2x32xf32>
    %61 = arith.mulf %56, %60 : vector<2x32xf32>
    %62 = vector.broadcast %16 : vector<1x32xf32> to vector<2x32xf32>
    %63 = arith.mulf %61, %62 : vector<2x32xf32>
    %64 = vector.broadcast %17 : vector<1x32xf32> to vector<2x32xf32>
    %65 = arith.addf %63, %64 : vector<2x32xf32>
    %c0_20 = arith.constant 0 : index
    %c0_21 = arith.constant 0 : index
    %66 = vector.load %arg4[%c0_20, %c0_21] : memref<2x32xf32, #tpu.memory_space<vmem>>, vector<2x32xf32>
    tpu.vector_store %arg4[%c0_20, %c0_21], %65 {strides = array<i32>} : memref<2x32xf32, #tpu.memory_space<vmem>>, vector<2x32xf32>,
    return
  }
}

</mosaic_0001>

<llo_original>
// kernel: tpu_custom_call.1
$region0: #{tpu_custom_call.1}
  #allocation0 [shape = 'u32[]', space=smem, size = 0x4, offset = 0x4, fixed_abs, tag = 'smem constant byte address 0x4 - core index']
  #allocation1 [shape = 'u32[144,128]{1,0:T(1,128)}', space=vmem, size = 0x12000, scoped, tag = 'internal scratch']
  %s0 = inlined_call_operand.hbm [shape: s32[2,8], index: 0, kind: input, shape index: {}]
  %s1 = inlined_call_operand.hbm [shape: f32[16,32], index: 1, kind: input, shape index: {}]
  %s2 = inlined_call_operand.hbm [shape: f32[32,32], index: 2, kind: input, shape index: {}]
  %s3 = inlined_call_operand.vmem [shape: f32[5,32], index: 3, kind: input, shape index: {}]
  %s4 = inlined_call_operand.hbm [shape: f32[2,32], index: 4, kind: output, shape index: {}]
  %s5 = sld [smem:[#allocation0]]
  $region38: #{tpu_custom_call.1} parent=0
    _
  %s7 = ssub.s32 1, %s5
  %s8 = scalar_select 0, %s7, %s5
  $region1: #{tpu_custom_call.1} parent=0
    #allocation2 [shape = 'u8[1024]{0}', space=vmem, size = 0x400, scoped, tag = 'input window, operand 0, single buffered']
    #allocation3 [shape = 's32[1]{0}', space=sflag, size = 0x4, scoped, tag = 'scoped memory for tpu_custom_call.1']
    #allocation4 [shape = 's32[1]{0}', space=sflag, size = 0x4, scoped, tag = 'scoped memory for tpu_custom_call.1']
    #allocation5 [shape = 'u8[8192]{0}', space=vmem, size = 0x2000, scoped, tag = 'input window, operand 1, single buffered']
    #allocation6 [shape = 's32[1]{0}', space=sflag, size = 0x4, scoped, tag = 'scoped memory for tpu_custom_call.1']
    #allocation7 [shape = 'u8[16384]{0}', space=vmem, size = 0x4000, scoped, tag = 'input window, operand 2, single buffered']
    #allocation8 [shape = 'u8[1024]{0}', space=vmem, size = 0x400, scoped, tag = 'output window, operand 0, single buffered']
    %9 = vsyncpa [#allocation3], 0
    %10 = vsyncpa [#allocation6], 0
    %11 = vsyncpa [#allocation4], 0
    // Predicated region
    $region2: #{tpu_custom_call.1} parent=1 // pred_check
      _
    $region3: #{tpu_custom_call.1} parent=1 // pred_check_branch
      %13 = sbr.rel (0) target = $region5
    $region4: #{tpu_custom_call.1} parent=1 // pred_region
      %s15 = ssub.s32 32, 32
      %16 = vsyncadd [#allocation3], %s15
      %s18 = sshll.u32 [#allocation2], 4
      %s19 = int_to_ptr.vmem [resolvable:$true] %s18
      %21 = dma.hbm_to_vmem [thread:$0]  %s0, 32, %s19, [#allocation3]
    $region5: #{tpu_custom_call.1} parent=1 // pred_fallthru
      _
    // Predicated region
    $region6: #{tpu_custom_call.1} parent=1 // pred_check
      _
    $region7: #{tpu_custom_call.1} parent=1 // pred_check_branch
      %23 = sbr.rel (0) target = $region9
    $region8: #{tpu_custom_call.1} parent=1 // pred_region
      %s25 = ssub.s32 256, 256
      %26 = vsyncadd [#allocation6], %s25
      %s27 = sshll.u32 [#allocation5], 4
      %s28 = int_to_ptr.vmem [resolvable:$true] %s27
      %33 = dma.hbm_to_vmem [thread:$0]  %s1, 256, %s28, [#allocation6], 128, 128, 8
    $region9: #{tpu_custom_call.1} parent=1 // pred_fallthru
      _
    // Predicated region
    $region10: #{tpu_custom_call.1} parent=1 // pred_check
      _
    $region11: #{tpu_custom_call.1} parent=1 // pred_check_branch
      %35 = sbr.rel (0) target = $region13
    $region12: #{tpu_custom_call.1} parent=1 // pred_region
      %s37 = ssub.s32 512, 512
      %38 = vsyncadd [#allocation6], %s37
      %s39 = sshll.u32 [#allocation7], 4
      %s40 = int_to_ptr.vmem [resolvable:$true] %s39
      %45 = dma.hbm_to_vmem [thread:$0]  %s2, 512, %s40, [#allocation6], 128, 128, 8
    $region13: #{tpu_custom_call.1} parent=1 // pred_fallthru
      _
    // Predicated region
    $region14: #{tpu_custom_call.1} parent=1 // pred_check
      _
    $region15: #{tpu_custom_call.1} parent=1 // pred_check_branch
      %47 = sbr.rel (0) target = $region17
    $region16: #{tpu_custom_call.1} parent=1 // pred_region
      _
    $region17: #{tpu_custom_call.1} parent=1 // pred_fallthru
      _
    // Predicated region
    $region18: #{tpu_custom_call.1} parent=1 // pred_check
      _
    $region19: #{tpu_custom_call.1} parent=1 // pred_check_branch
      %49 = sbr.rel (0) target = $region21
    $region20: #{tpu_custom_call.1} parent=1 // pred_region
      %50 = dma.done [#allocation3], 32
    $region21: #{tpu_custom_call.1} parent=1 // pred_fallthru
      _
    // Predicated region
    $region22: #{tpu_custom_call.1} parent=1 // pred_check
      _
    $region23: #{tpu_custom_call.1} parent=1 // pred_check_branch
      %52 = sbr.rel (0) target = $region25
    $region24: #{tpu_custom_call.1} parent=1 // pred_region
      %53 = dma.done [#allocation6], 256
    $region25: #{tpu_custom_call.1} parent=1 // pred_fallthru
      _
    // Predicated region
    $region26: #{tpu_custom_call.1} parent=1 // pred_check
      _
    $region27: #{tpu_custom_call.1} parent=1 // pred_check_branch
      %55 = sbr.rel (0) target = $region29
    $region28: #{tpu_custom_call.1} parent=1 // pred_region
      %56 = dma.done [#allocation6], 512
    $region29: #{tpu_custom_call.1} parent=1 // pred_fallthru
      _
    %v57 = vld [vmem:[#allocation2] sm:$0x3]
    %v58 = vlaneseq
    %v59 = vand.u32 %v58, 127
    %v60 = vlaneseq
    %v61 = vshrl.u32 %v60, 7
    %v62 = vsub.s32 0, %v61
    %v63 = vrot.slane %v57, %v62
    %65 = vbcast.lane.b32.xlu0 %v63, 256
    %v66 = vpop.permute.xlu0 %65
    %v67 = vlaneseq
    %v68 = vshrl.u32 %v67, 7
    %v69 = vsub.s32 1, %v68
    %v70 = vrot.slane %v57, %v69
    %72 = vbcast.lane.b32.xlu0 %v70, 256
    %v73 = vpop.permute.xlu0 %72
    %vm74 = vcmp.eq.s32.totalorder %v59, %v66
    %vm75 = vcmp.eq.s32.totalorder %v59, %v73
    %v76 = vsel %vm74, 1, 0
    %v77 = vsel %vm75, 1, 0
    %v78 = vcvt.s32.f32 %v76
    %v79 = vcvt.s32.f32 %v77
    %vm80 = vcmask 130048
    %v81 = vsel %vm80, %v78, 0.0
    %v82 = vrot.slane %v81, 4
    %v83 = vadd.f32 %v81, %v82
    %v84 = vrot.slane %v83, 2
    %v85 = vadd.f32 %v83, %v84
    %v86 = vrot.slane %v85, 1
    %v87 = vadd.f32 %v85, %v86
    %v88 = vsel %vm80, %v79, 0.0
    %v89 = vrot.slane %v88, 4
    %v90 = vadd.f32 %v88, %v89
    %v91 = vrot.slane %v90, 2
    %v92 = vadd.f32 %v90, %v91
    %v93 = vrot.slane %v92, 1
    %v94 = vadd.f32 %v92, %v93
    %v95 = vmul.f32 %v87, 0.125
    %v96 = vmul.f32 %v94, 0.125
    %v97 = vld [vmem:[#allocation5] sm:$0xff]
    %v98 = vld [vmem:[#allocation5 + $0x8] sm:$0xff]
    %vm101 = vcmask 1041409
    %v102 = vsel %vm101, %v96, %v95
    %v103 = vsel %vm80, %v102, 0
    %105 = vmatprep.subr.mxu0 0.0
    %106 = vmatpush1.msra.mxu0 %v97
    %107 = vmatprep.subr.mxu0 0.0
    %108 = vmatpush1.msra.mxu0 %v98
    %109 = vmatprep.subr.mxu0 0.0
    %110 = vmatpush1.msra.mxu0 0.0
    %111 = vmatprep.subr.mxu0 0.0
    %112 = vmatpush1.msra.mxu0 0.0
    %113 = vmatprep.subr.mxu0 0.0
    %114 = vmatpush1.msra.mxu0 0.0
    %115 = vmatprep.subr.mxu0 0.0
    %116 = vmatpush1.msra.mxu0 0.0
    %117 = vmatprep.subr.mxu0 0.0
    %118 = vmatpush1.msra.mxu0 0.0
    %119 = vmatprep.subr.mxu0 0.0
    %120 = vmatpush1.msra.mxu0 0.0
    %121 = vmatprep.subr.mxu0 0.0
    %122 = vmatpush1.msra.mxu0 0.0
    %123 = vmatprep.subr.mxu0 0.0
    %124 = vmatpush1.msra.mxu0 0.0
    %125 = vmatprep.subr.mxu0 0.0
    %126 = vmatpush1.msra.mxu0 0.0
    %127 = vmatprep.subr.mxu0 0.0
    %128 = vmatpush1.msra.mxu0 0.0
    %129 = vmatprep.subr.mxu0 0.0
    %130 = vmatpush1.msra.mxu0 0.0
    %131 = vmatprep.subr.mxu0 0.0
    %132 = vmatpush1.msra.mxu0 0.0
    %133 = vmatprep.subr.mxu0 0.0
    %134 = vmatpush1.msra.mxu0 0.0
    %135 = vmatprep.subr.mxu0 0.0
    %136 = vmatpush1.msra.mxu0 0.0
    %137 = vmatprep.subr.mxu0 0.0
    %138 = vmatpush1.msra.mxu0 0.0
    %139 = vmatprep.subr.mxu0 0.0
    %140 = vmatpush1.msra.mxu0 0.0
    %141 = vmatprep.subr.mxu0 0.0
    %142 = vmatpush1.msra.mxu0 0.0
    %143 = vmatprep.subr.mxu0 0.0
    %144 = vmatpush1.msra.mxu0 0.0
    %145 = vmatprep.subr.mxu0 0.0
    %146 = vmatpush1.msra.mxu0 0.0
    %147 = vmatprep.subr.mxu0 0.0
    %148 = vmatpush1.msra.mxu0 0.0
    %149 = vmatprep.subr.mxu0 0.0
    %150 = vmatpush1.msra.mxu0 0.0
    %151 = vmatprep.subr.mxu0 0.0
    %152 = vmatpush1.msra.mxu0 0.0
    %153 = vmatprep.subr.mxu0 0.0
    %154 = vmatpush1.msra.mxu0 0.0
    %155 = vmatprep.subr.mxu0 0.0
    %156 = vmatpush1.msra.mxu0 0.0
    %157 = vmatprep.subr.mxu0 0.0
    %158 = vmatpush1.msra.mxu0 0.0
    %159 = vmatprep.subr.mxu0 0.0
    %160 = vmatpush1.msra.mxu0 0.0
    %161 = vmatprep.subr.mxu0 0.0
    %162 = vmatpush1.msra.mxu0 0.0
    %163 = vmatprep.subr.mxu0 0.0
    %164 = vmatpush1.msra.mxu0 0.0
    %165 = vmatprep.subr.mxu0 0.0
    %166 = vmatpush1.msra.mxu0 0.0
    %167 = vmatprep.subr.mxu0 0.0
    %168 = vmatpush1.msra.mxu0 0.0
    %169 = vmatprep.mubr.f32.mxu0 0.0
    %170 = vmatmul.mubr.f32.gmra.mrb[0].mxu0 %v103
    %v171 = vpop.f32.mrb[0].mxu0
    %v172 = vadd.f32 0.0, %v171
    %v173 = vpop.f32.mrb[0].mxu0
    %174 = vdwg.mxu0
    %v175 = vld [vmem:[%s3] sm:$0x1f]
    %v176 = vld [vmem:[#allocation7] sm:$0xff]
    %v177 = vld [vmem:[#allocation7 + $0x8] sm:$0xff]
    %v178 = vld [vmem:[#allocation7 + $0x10] sm:$0xff]
    %v179 = vld [vmem:[#allocation7 + $0x18] sm:$0xff]
    %v180 = vlaneseq
    %v181 = vshrl.u32 %v180, 7
    %v182 = vsub.s32 0, %v181
    %v183 = vrot.slane %v175, %v182
    %vm184 = vcmask 261120
    %v186 = vsel %vm184, %v172, 0
    %188 = vmatprep.subr.mxu0 0.0
    %189 = vmatpush1.msra.mxu0 %v176
    %190 = vmatprep.subr.mxu0 0.0
    %191 = vmatpush1.msra.mxu0 %v177
    %192 = vmatprep.subr.mxu0 0.0
    %193 = vmatpush1.msra.mxu0 %v178
    %194 = vmatprep.subr.mxu0 0.0
    %195 = vmatpush1.msra.mxu0 %v179
    %196 = vmatprep.subr.mxu0 0.0
    %197 = vmatpush1.msra.mxu0 0.0
    %198 = vmatprep.subr.mxu0 0.0
    %199 = vmatpush1.msra.mxu0 0.0
    %200 = vmatprep.subr.mxu0 0.0
    %201 = vmatpush1.msra.mxu0 0.0
    %202 = vmatprep.subr.mxu0 0.0
    %203 = vmatpush1.msra.mxu0 0.0
    %204 = vmatprep.subr.mxu0 0.0
    %205 = vmatpush1.msra.mxu0 0.0
    %206 = vmatprep.subr.mxu0 0.0
    %207 = vmatpush1.msra.mxu0 0.0
    %208 = vmatprep.subr.mxu0 0.0
    %209 = vmatpush1.msra.mxu0 0.0
    %210 = vmatprep.subr.mxu0 0.0
    %211 = vmatpush1.msra.mxu0 0.0
    %212 = vmatprep.subr.mxu0 0.0
    %213 = vmatpush1.msra.mxu0 0.0
    %214 = vmatprep.subr.mxu0 0.0
    %215 = vmatpush1.msra.mxu0 0.0
    %216 = vmatprep.subr.mxu0 0.0
    %217 = vmatpush1.msra.mxu0 0.0
    %218 = vmatprep.subr.mxu0 0.0
    %219 = vmatpush1.msra.mxu0 0.0
    %220 = vmatprep.subr.mxu0 0.0
    %221 = vmatpush1.msra.mxu0 0.0
    %222 = vmatprep.subr.mxu0 0.0
    %223 = vmatpush1.msra.mxu0 0.0
    %224 = vmatprep.subr.mxu0 0.0
    %225 = vmatpush1.msra.mxu0 0.0
    %226 = vmatprep.subr.mxu0 0.0
    %227 = vmatpush1.msra.mxu0 0.0
    %228 = vmatprep.subr.mxu0 0.0
    %229 = vmatpush1.msra.mxu0 0.0
    %230 = vmatprep.subr.mxu0 0.0
    %231 = vmatpush1.msra.mxu0 0.0
    %232 = vmatprep.subr.mxu0 0.0
    %233 = vmatpush1.msra.mxu0 0.0
    %234 = vmatprep.subr.mxu0 0.0
    %235 = vmatpush1.msra.mxu0 0.0
    %236 = vmatprep.subr.mxu0 0.0
    %237 = vmatpush1.msra.mxu0 0.0
    %238 = vmatprep.subr.mxu0 0.0
    %239 = vmatpush1.msra.mxu0 0.0
    %240 = vmatprep.subr.mxu0 0.0
    %241 = vmatpush1.msra.mxu0 0.0
    %242 = vmatprep.subr.mxu0 0.0
    %243 = vmatpush1.msra.mxu0 0.0
    %244 = vmatprep.subr.mxu0 0.0
    %245 = vmatpush1.msra.mxu0 0.0
    %246 = vmatprep.subr.mxu0 0.0
    %247 = vmatpush1.msra.mxu0 0.0
    %248 = vmatprep.subr.mxu0 0.0
    %249 = vmatpush1.msra.mxu0 0.0
    %250 = vmatprep.subr.mxu0 0.0
    %251 = vmatpush1.msra.mxu0 0.0
    %252 = vmatprep.mubr.f32.mxu0 0.0
    %253 = vmatmul.mubr.f32.gmra.mrb[0].mxu0 %v186
    %v254 = vpop.f32.mrb[0].mxu0
    %v255 = vadd.f32 %v183, %v254
    %v256 = vpop.f32.mrb[0].mxu0
    %257 = vdwg.mxu0
    %vm258 = vcmask 254976
    %v259 = vsel %vm258, %v255, 0.0
    %v260 = vrot.slane %v259, 4
    %v261 = vadd.f32 %v259, %v260
    %v262 = vrot.slane %v261, 2
    %v263 = vadd.f32 %v261, %v262
    %v264 = vrot.slane %v263, 1
    %v265 = vadd.f32 %v263, %v264
    %v266 = vrcp.pop 2.0
    %v267 = vmul.f32 %v265, %v266
    %v268 = vsub.f32 %v255, %v267
    %v269 = vmul.f32 %v268, %v268
    %v270 = vsel %vm258, %v269, 0.0
    %v271 = vrot.slane %v270, 4
    %v272 = vadd.f32 %v270, %v271
    %v273 = vrot.slane %v272, 2
    %v274 = vadd.f32 %v272, %v273
    %v275 = vrot.slane %v274, 1
    %v276 = vadd.f32 %v274, %v275
    %v277 = vmul.f32 %v276, %v266
    %v278 = vadd.f32 %v277, 1e-05
    %v279 = vrsqrt.pop %v278
    %v280 = vmul.f32 %v268, %v279
    %v281 = vlaneseq
    %v282 = vshrl.u32 %v281, 7
    %v283 = vsub.s32 1, %v282
    %v284 = vrot.slane %v175, %v283
    %v285 = vmul.f32 %v280, %v284
    %v286 = vlaneseq
    %v287 = vshrl.u32 %v286, 7
    %v288 = vsub.s32 2, %v287
    %v289 = vrot.slane %v175, %v288
    %v290 = vadd.f32 %v285, %v289
    %v291 = vsel %vm258, %v290, 0.0
    %292 = vadd.xlane.f32.xlu0 %v291
    %v293 = vpop.xlane.xlu0 %292
    %v294 = vrcp.pop 32.0
    %v295 = vmul.f32 %v293, %v294
    %v296 = vsub.f32 %v290, %v295
    %v297 = vmul.f32 %v296, %v296
    %v298 = vsel %vm258, %v297, 0.0
    %299 = vadd.xlane.f32.xlu0 %v298
    %v300 = vpop.xlane.xlu0 %299
    %v301 = vmul.f32 %v300, %v294
    %v302 = vadd.f32 %v301, 1e-05
    %v303 = vrsqrt.pop %v302
    %v304 = vmul.f32 %v296, %v303
    %v305 = vlaneseq
    %v306 = vshrl.u32 %v305, 7
    %v307 = vsub.s32 3, %v306
    %v308 = vrot.slane %v175, %v307
    %v309 = vmul.f32 %v304, %v308
    %v310 = vlaneseq
    %v311 = vshrl.u32 %v310, 7
    %v312 = vsub.s32 4, %v311
    %v313 = vrot.slane %v175, %v312
    %v314 = vadd.f32 %v309, %v313
    %315 = vst.msk [vmem:[#allocation8] sm:$0x3] %vm258, %v314
    // Predicated region
    $region30: #{tpu_custom_call.1} parent=1 // pred_check
      _
    $region31: #{tpu_custom_call.1} parent=1 // pred_check_branch
      %317 = sbr.rel (0) target = $region33
    $region32: #{tpu_custom_call.1} parent=1 // pred_region
      %s319 = ssub.s32 32, 32
      %320 = vsyncadd [#allocation4], %s319
      %s322 = sshll.u32 [#allocation8], 4
      %s323 = int_to_ptr.vmem [resolvable:$true] %s322
      %325 = dma.vmem_to_hbm [thread:$0]  %s323, 32, %s4, [#allocation4]
    $region33: #{tpu_custom_call.1} parent=1 // pred_fallthru
      _
    // Predicated region
    $region34: #{tpu_custom_call.1} parent=1 // pred_check
      _
    $region35: #{tpu_custom_call.1} parent=1 // pred_check_branch
      %327 = sbr.rel (0) target = $region37
    $region36: #{tpu_custom_call.1} parent=1 // pred_region
      %328 = dma.done [#allocation4], 32
    $region37: #{tpu_custom_call.1} parent=1 // pred_fallthru
      _
    %329 = vsyncpa [#allocation3], 1
    %330 = vsyncpa [#allocation6], 1
    %331 = vsyncpa [#allocation4], 1

</llo_original>
